<compile_context>
chip_gen: v7x
topology: tpu7x:2x2x1
jax: 0.10.0
libtpu: 0.0.40
codegen_flags: <defaults>
</compile_context>

<pallas_src>
import functools

import jax
import jax.numpy as jnp
from jax.experimental import pallas as pl
from jax.experimental.pallas import tpu as pltpu


def _reward_criterion_kernel(inp_ref, seq_ref, rew_ref, msk_ref,
                             num_ref, den_ref, *, total_l):
    l_tile = pl.program_id(1)

    @pl.when(l_tile == 0)
    def _init():
        num_ref[...] = jnp.zeros_like(num_ref)
        den_ref[...] = jnp.zeros_like(den_ref)

    inp = inp_ref[...].astype(jnp.float32)        # (TN, TL, V) f32
    seq = seq_ref[...]                            # (TN, TL, 1) i32
    rew = rew_ref[...]                            # (TN, TL, 1) f32
    msk = msk_ref[...]                            # (TN, TL, 1) f32
    tn, tl, v = inp.shape

    # gather log-prob of the sampled token: one-hot over the vocab (lane)
    # axis + lane (XLU) reduction; per-tile temporaries only.
    vocab_ids = jax.lax.broadcasted_iota(jnp.int32, (tn, tl, v), 2)
    gathered = jnp.sum(jnp.where(vocab_ids == seq, inp, 0.0),
                       axis=2, keepdims=True)     # (TN, TL, 1)

    # validity mask for the (possibly OOB-padded) last token tile
    pos = l_tile * tl + jax.lax.broadcasted_iota(jnp.int32, (tn, tl, 1), 1)
    valid = pos < total_l

    out = jnp.where(valid, -gathered * rew * msk, 0.0)
    mvl = jnp.where(valid, msk, 0.0)

    # accumulate into the resident per-row output blocks
    num_ref[...] += jnp.sum(out, axis=1, keepdims=True)   # (TN, 1, 1)
    den_ref[...] += jnp.sum(mvl, axis=1, keepdims=True)   # (TN, 1, 1)


def _choose_tiles(N, L, V, itemsize, budget_bytes=4 * 1024 * 1024):
    """Pick (TN, TL) so one streamed input buffer stays ~budget_bytes."""
    rows = max(1, budget_bytes // max(1, V * itemsize))   # token rows / buffer
    if rows >= L:
        # whole caption fits -> pack several batch rows per tile to amortize
        # the per-grid-step overhead.
        tl = L
        tn = int(max(1, min(N, rows // max(1, L))))
    else:
        # huge vocab -> split the token axis (keep sublane alignment).
        tl = int(min(L, max(8, (rows // 8) * 8)))
        tn = 1
    return tn, tl


def reward_criterion(inp, seq, reward, reduction="mean",
                     tile_l=None, tile_n=None):
    N, L, V = inp.shape
    seq = seq.astype(jnp.int32)
    reward = reward.astype(jnp.float32)

    # Shifted mask precomputed in the wrapper (O(N*L) glue) so token tiles
    # are independent (no cross-tile carry of seq[l-1]).
    mask = jnp.concatenate(
        [jnp.ones((N, 1), jnp.float32),
         (seq[:, : L - 1] > 0).astype(jnp.float32)], axis=1)

    auto_tn, auto_tl = _choose_tiles(N, L, V, inp.dtype.itemsize)
    TL = int(tile_l) if tile_l is not None else auto_tl
    TN = int(tile_n) if tile_n is not None else auto_tn
    TL = min(TL, L)
    TN = min(TN, N)

    grid = (pl.cdiv(N, TN), pl.cdiv(L, TL))

    seq3 = seq.reshape(N, L, 1)
    rew3 = reward.reshape(N, L, 1)
    msk3 = mask.reshape(N, L, 1)

    kernel = functools.partial(_reward_criterion_kernel, total_l=L)

    num, den = pl.pallas_call(
        kernel,
        grid=grid,
        in_specs=[
            pl.BlockSpec((TN, TL, V), lambda n, l: (n, l, 0)),
            pl.BlockSpec((TN, TL, 1), lambda n, l: (n, l, 0)),
            pl.BlockSpec((TN, TL, 1), lambda n, l: (n, l, 0)),
            pl.BlockSpec((TN, TL, 1), lambda n, l: (n, l, 0)),
        ],
        out_specs=(
            pl.BlockSpec((TN, 1, 1), lambda n, l: (n, 0, 0)),
            pl.BlockSpec((TN, 1, 1), lambda n, l: (n, 0, 0)),
        ),
        out_shape=(
            jax.ShapeDtypeStruct((N, 1, 1), jnp.float32),
            jax.ShapeDtypeStruct((N, 1, 1), jnp.float32),
        ),
        compiler_params=pltpu.CompilerParams(
            dimension_semantics=("parallel", "arbitrary"),
            vmem_limit_bytes=48 * 1024 * 1024,
        ),
    )(inp, seq3, rew3, msk3)

    num = num.reshape(N)
    den = den.reshape(N)
    if reduction == "none":
        return num / den                       # (N,)
    elif reduction == "mean":
        return jnp.sum(num) / jnp.sum(den)     # scalar
    else:
        raise ValueError(f"unsupported reduction: {reduction}")


def _reference(inp, seq, reward, reduction="mean"):
    # pure-JAX reference mirroring the PyTorch forward
    N, L, V = inp.shape
    gathered = jnp.take_along_axis(
        inp.astype(jnp.float32), seq[..., None], axis=2)[..., 0]
    m = (seq > 0).astype(jnp.float32)
    mask = jnp.concatenate([jnp.ones((N, 1), jnp.float32), m[:, :-1]], axis=1)
    out = -gathered * reward.astype(jnp.float32) * mask
    if reduction == "none":
        return out.sum(1) / mask.sum(1)
    return jnp.sum(out) / jnp.sum(mask)


if __name__ == "__main__":
    root = jax.random.PRNGKey(0)

    def make_inputs(key, N, L, V):
        k1, k2, k3, k4 = jax.random.split(key, 4)
        logits = jax.random.normal(k1, (N, L, V), dtype=jnp.float32)
        inp = jax.nn.log_softmax(logits, axis=-1)
        seq = jax.random.randint(k2, (N, L), 0, V, dtype=jnp.int32)
        zero_from = L // 2
        drop = jax.random.uniform(k3, (N, L - zero_from)) < 0.4
        seq = seq.at[:, zero_from:].set(
            jnp.where(drop, 0, seq[:, zero_from:]))
        reward = jax.random.normal(k4, (N, L), dtype=jnp.float32)
        return inp, seq, reward

    ok = True
    # config 1: small module-consistent shapes, everything in one tile
    # config 2: forces multiple token tiles + a partial last token tile
    #           (exercises accumulation across L and OOB-token masking)
    # config 3: forces multiple batch tiles + a partial last batch tile
    #           (exercises TN > 1 packing and partial-row writeback clipping)
    configs = [
        (2, 8, 32, None, None),
        (3, 20, 128, 8, 1),
        (5, 6, 128, None, 2),
    ]
    for (N, L, V, tile_l, tile_n), key in zip(
            configs, jax.random.split(root, len(configs))):
        inp, seq, reward = make_inputs(key, N, L, V)
        out_mean = jax.block_until_ready(
            reward_criterion(inp, seq, reward, "mean",
                             tile_l=tile_l, tile_n=tile_n))
        out_none = jax.block_until_ready(
            reward_criterion(inp, seq, reward, "none",
                             tile_l=tile_l, tile_n=tile_n))
        ref_mean = _reference(inp, seq, reward, "mean")
        ref_none = _reference(inp, seq, reward, "none")
        ok &= bool(jnp.allclose(out_mean, ref_mean, atol=1e-5, rtol=1e-5))
        ok &= bool(jnp.allclose(out_none, ref_none, atol=1e-5, rtol=1e-5))

    assert ok
    print("KERNEL_OK")
</pallas_src>

<mosaic_0001>
module attributes {stable_mosaic.version = 11 : i64} {
  func.func @_reward_criterion_kernel(%arg0: i32, %arg1: i32, %arg2: memref<2x8x32xf32, #tpu.memory_space<vmem>>, %arg3: memref<2x8x1xi32, #tpu.memory_space<vmem>>, %arg4: memref<2x8x1xf32, #tpu.memory_space<vmem>>, %arg5: memref<2x8x1xf32, #tpu.memory_space<vmem>>, %arg6: memref<2x1x1xf32, #tpu.memory_space<vmem>>, %arg7: memref<2x1x1xf32, #tpu.memory_space<vmem>>) attributes {dimension_semantics = [#tpu.dimension_semantics<parallel>, #tpu.dimension_semantics<arbitrary>], iteration_bounds = array<i64: 1, 1>, scalar_prefetch = 0 : i64, scratch_operands = 0 : i64, tpu.core_type = #tpu.core_type<tc>, window_params = [{transform_indices = @transform_0, window_bounds = array<i64: 2, 8, 32>}, {transform_indices = @transform_1, window_bounds = array<i64: 2, 8, 1>}, {transform_indices = @transform_2, window_bounds = array<i64: 2, 8, 1>}, {transform_indices = @transform_3, window_bounds = array<i64: 2, 8, 1>}, {transform_indices = @transform_4, window_bounds = array<i64: 2, 1, 1>}, {transform_indices = @transform_5, window_bounds = array<i64: 2, 1, 1>}]} {
    %c0_i32 = arith.constant 0 : i32
    %0 = arith.cmpi eq, %arg1, %c0_i32 : i32
    %1 = arith.extui %0 : i1 to i32
    %c0_i32_0 = arith.constant 0 : i32
    %2 = arith.cmpi ne, %1, %c0_i32_0 : i32
    scf.if %2 {
      %cst_31 = arith.constant 0.000000e+00 : f32
      %38 = vector.broadcast %cst_31 : f32 to vector<2x1x1xf32>
      %c0_32 = arith.constant 0 : index
      %c0_33 = arith.constant 0 : index
      %c0_34 = arith.constant 0 : index
      %39 = vector.load %arg6[%c0_32, %c0_33, %c0_34] : memref<2x1x1xf32, #tpu.memory_space<vmem>>, vector<2x1x1xf32>
      tpu.vector_store %arg6[%c0_32, %c0_33, %c0_34], %38 {strides = array<i32>} : memref<2x1x1xf32, #tpu.memory_space<vmem>>, vector<2x1x1xf32>,
      %cst_35 = arith.constant 0.000000e+00 : f32
      %40 = vector.broadcast %cst_35 : f32 to vector<2x1x1xf32>
      %c0_36 = arith.constant 0 : index
      %c0_37 = arith.constant 0 : index
      %c0_38 = arith.constant 0 : index
      %41 = vector.load %arg7[%c0_36, %c0_37, %c0_38] : memref<2x1x1xf32, #tpu.memory_space<vmem>>, vector<2x1x1xf32>
      tpu.vector_store %arg7[%c0_36, %c0_37, %c0_38], %40 {strides = array<i32>} : memref<2x1x1xf32, #tpu.memory_space<vmem>>, vector<2x1x1xf32>,
    } else {
    }
    %c0 = arith.constant 0 : index
    %c0_1 = arith.constant 0 : index
    %c0_2 = arith.constant 0 : index
    %3 = vector.load %arg2[%c0, %c0_1, %c0_2] : memref<2x8x32xf32, #tpu.memory_space<vmem>>, vector<2x8x32xf32>
    %c0_3 = arith.constant 0 : index
    %c0_4 = arith.constant 0 : index
    %c0_5 = arith.constant 0 : index
    %4 = vector.load %arg3[%c0_3, %c0_4, %c0_5] : memref<2x8x1xi32, #tpu.memory_space<vmem>>, vector<2x8x1xi32>
    %c0_6 = arith.constant 0 : index
    %c0_7 = arith.constant 0 : index
    %c0_8 = arith.constant 0 : index
    %5 = vector.load %arg4[%c0_6, %c0_7, %c0_8] : memref<2x8x1xf32, #tpu.memory_space<vmem>>, vector<2x8x1xf32>
    %c0_9 = arith.constant 0 : index
    %c0_10 = arith.constant 0 : index
    %c0_11 = arith.constant 0 : index
    %6 = vector.load %arg5[%c0_9, %c0_10, %c0_11] : memref<2x8x1xf32, #tpu.memory_space<vmem>>, vector<2x8x1xf32>
    %7 = tpu.iota {dimensions = array<i32: 2>} : vector<2x8x32xi32>
    %8 = vector.broadcast %4 : vector<2x8x1xi32> to vector<2x8x32xi32>
    %9 = arith.cmpi eq, %7, %8 : vector<2x8x32xi32>
    %cst = arith.constant 0.000000e+00 : f32
    %10 = vector.broadcast %cst : f32 to vector<2x8x32xf32>
    %11 = arith.select %9, %3, %10 : vector<2x8x32xi1>, vector<2x8x32xf32>
    %cst_12 = arith.constant dense<0.000000e+00> : vector<2x8xf32>
    %12 = vector.multi_reduction <add>, %11, %cst_12 [2] : vector<2x8x32xf32> to vector<2x8xf32>
    %13 = vector.shape_cast %12 : vector<2x8xf32> to vector<2x8x1xf32>
    %c8_i32 = arith.constant 8 : i32
    %14 = arith.muli %arg1, %c8_i32 : i32
    %15 = tpu.iota {dimensions = array<i32: 1>} : vector<2x8x1xi32>
    %16 = vector.broadcast %14 : i32 to vector<2x8x1xi32>
    %17 = arith.addi %16, %15 : vector<2x8x1xi32>
    %c8_i32_13 = arith.constant 8 : i32
    %18 = vector.broadcast %c8_i32_13 : i32 to vector<2x8x1xi32>
    %19 = arith.cmpi slt, %17, %18 : vector<2x8x1xi32>
    %cst_14 = arith.constant 0.000000e+00 : f32
    %20 = vector.broadcast %cst_14 : f32 to vector<2x8x1xf32>
    %21 = arith.subf %20, %13 : vector<2x8x1xf32>
    %22 = arith.mulf %21, %5 : vector<2x8x1xf32>
    %23 = arith.mulf %22, %6 : vector<2x8x1xf32>
    %cst_15 = arith.constant 0.000000e+00 : f32
    %24 = vector.broadcast %cst_15 : f32 to vector<2x8x1xf32>
    %25 = arith.select %19, %23, %24 : vector<2x8x1xi1>, vector<2x8x1xf32>
    %cst_16 = arith.constant 0.000000e+00 : f32
    %26 = vector.broadcast %cst_16 : f32 to vector<2x8x1xf32>
    %27 = arith.select %19, %6, %26 : vector<2x8x1xi1>, vector<2x8x1xf32>
    %c0_17 = arith.constant 0 : index
    %c0_18 = arith.constant 0 : index
    %c0_19 = arith.constant 0 : index
    %28 = vector.load %arg6[%c0_17, %c0_18, %c0_19] : memref<2x1x1xf32, #tpu.memory_space<vmem>>, vector<2x1x1xf32>
    %cst_20 = arith.constant dense<0.000000e+00> : vector<2x1xf32>
    %29 = vector.multi_reduction <add>, %25, %cst_20 [1] : vector<2x8x1xf32> to vector<2x1xf32>
    %30 = vector.shape_cast %29 : vector<2x1xf32> to vector<2x1x1xf32>
    %31 = arith.addf %28, %30 : vector<2x1x1xf32>
    %c0_21 = arith.constant 0 : index
    %c0_22 = arith.constant 0 : index
    %c0_23 = arith.constant 0 : index
    %32 = vector.load %arg6[%c0_21, %c0_22, %c0_23] : memref<2x1x1xf32, #tpu.memory_space<vmem>>, vector<2x1x1xf32>
    tpu.vector_store %arg6[%c0_21, %c0_22, %c0_23], %31 {strides = array<i32>} : memref<2x1x1xf32, #tpu.memory_space<vmem>>, vector<2x1x1xf32>,
    %c0_24 = arith.constant 0 : index
    %c0_25 = arith.constant 0 : index
    %c0_26 = arith.constant 0 : index
    %33 = vector.load %arg7[%c0_24, %c0_25, %c0_26] : memref<2x1x1xf32, #tpu.memory_space<vmem>>, vector<2x1x1xf32>
    %cst_27 = arith.constant dense<0.000000e+00> : vector<2x1xf32>
    %34 = vector.multi_reduction <add>, %27, %cst_27 [1] : vector<2x8x1xf32> to vector<2x1xf32>
    %35 = vector.shape_cast %34 : vector<2x1xf32> to vector<2x1x1xf32>
    %36 = arith.addf %33, %35 : vector<2x1x1xf32>
    %c0_28 = arith.constant 0 : index
    %c0_29 = arith.constant 0 : index
    %c0_30 = arith.constant 0 : index
    %37 = vector.load %arg7[%c0_28, %c0_29, %c0_30] : memref<2x1x1xf32, #tpu.memory_space<vmem>>, vector<2x1x1xf32>
    tpu.vector_store %arg7[%c0_28, %c0_29, %c0_30], %36 {strides = array<i32>} : memref<2x1x1xf32, #tpu.memory_space<vmem>>, vector<2x1x1xf32>,
    return
  }
  func.func @transform_0(%arg0: i32, %arg1: i32) -> (i32, i32, i32) {
    %c0_i32 = arith.constant 0 : i32
    %c0_i32_0 = arith.constant 0 : i32
    return %arg0, %arg1, %c0_i32 : i32, i32, i32
  }
  func.func @transform_1(%arg0: i32, %arg1: i32) -> (i32, i32, i32) {
    %c0_i32 = arith.constant 0 : i32
    %c0_i32_0 = arith.constant 0 : i32
    return %arg0, %arg1, %c0_i32 : i32, i32, i32
  }
  func.func @transform_2(%arg0: i32, %arg1: i32) -> (i32, i32, i32) {
    %c0_i32 = arith.constant 0 : i32
    %c0_i32_0 = arith.constant 0 : i32
    return %arg0, %arg1, %c0_i32 : i32, i32, i32
  }
  func.func @transform_3(%arg0: i32, %arg1: i32) -> (i32, i32, i32) {
    %c0_i32 = arith.constant 0 : i32
    %c0_i32_0 = arith.constant 0 : i32
    return %arg0, %arg1, %c0_i32 : i32, i32, i32
  }
  func.func @transform_4(%arg0: i32, %arg1: i32) -> (i32, i32, i32) {
    %c0_i32 = arith.constant 0 : i32
    %c0_i32_0 = arith.constant 0 : i32
    %c0_i32_1 = arith.constant 0 : i32
    return %arg0, %c0_i32, %c0_i32_0 : i32, i32, i32
  }
  func.func @transform_5(%arg0: i32, %arg1: i32) -> (i32, i32, i32) {
    %c0_i32 = arith.constant 0 : i32
    %c0_i32_0 = arith.constant 0 : i32
    %c0_i32_1 = arith.constant 0 : i32
    return %arg0, %c0_i32, %c0_i32_0 : i32, i32, i32
  }
}

</mosaic_0001>

<llo_original>
// kernel: tpu_custom_call.1
$region0: #{tpu_custom_call.1}
  #allocation0 [shape = 'u32[]', space=smem, size = 0x4, offset = 0x4, fixed_abs, tag = 'smem constant byte address 0x4 - core index']
  #allocation1 [shape = 'u32[144,128]{1,0:T(1,128)}', space=vmem, size = 0x12000, scoped, tag = 'internal scratch']
  %s0 = inlined_call_operand.vmem [shape: f32[2,8,32], index: 0, kind: input, shape index: {}]
  %s1 = inlined_call_operand.vmem [shape: s32[2,8,1], index: 1, kind: input, shape index: {}]
  %s2 = inlined_call_operand.vmem [shape: f32[2,8,1], index: 2, kind: input, shape index: {}]
  %s3 = inlined_call_operand.vmem [shape: f32[2,8,1], index: 3, kind: input, shape index: {}]
  %s4 = inlined_call_operand.vmem [shape: f32[2,1,1], index: 4, kind: output, shape index: {0}]
  %s5 = inlined_call_operand.vmem [shape: f32[2,1,1], index: 5, kind: output, shape index: {1}]
  %6 = xla_tuple %s4, %s5
  %s7 = sld [smem:[#allocation0]]
  $region38: #{tpu_custom_call.1} parent=0
    _
  %s9 = ssub.s32 1, %s7
  %s10 = scalar_select 0, %s9, %s7
  // Predicated region
  $region2: #{tpu_custom_call.1} parent=0 // pred_check
    _
  $region3: #{tpu_custom_call.1} parent=0 // pred_check_branch
    %12 = sbr.rel (0) target = $region5
  $region4: #{tpu_custom_call.1} parent=0 // pred_region
    _
  $region5: #{tpu_custom_call.1} parent=0 // pred_fallthru
    _
  // Predicated region
  $region6: #{tpu_custom_call.1} parent=0 // pred_check
    _
  $region7: #{tpu_custom_call.1} parent=0 // pred_check_branch
    %14 = sbr.rel (0) target = $region9
  $region8: #{tpu_custom_call.1} parent=0 // pred_region
    _
  $region9: #{tpu_custom_call.1} parent=0 // pred_fallthru
    _
  // Predicated region
  $region10: #{tpu_custom_call.1} parent=0 // pred_check
    _
  $region11: #{tpu_custom_call.1} parent=0 // pred_check_branch
    %16 = sbr.rel (0) target = $region13
  $region12: #{tpu_custom_call.1} parent=0 // pred_region
    _
  $region13: #{tpu_custom_call.1} parent=0 // pred_fallthru
    _
  // Predicated region
  $region14: #{tpu_custom_call.1} parent=0 // pred_check
    _
  $region15: #{tpu_custom_call.1} parent=0 // pred_check_branch
    %18 = sbr.rel (0) target = $region17
  $region16: #{tpu_custom_call.1} parent=0 // pred_region
    _
  $region17: #{tpu_custom_call.1} parent=0 // pred_fallthru
    _
  %p19 = scmp.eq.s32.totalorder 0, 0
  // Predicated region
  $region18: #{tpu_custom_call.1} parent=0 // pred_check
    %p20 = pneg %p19
  $region19: #{tpu_custom_call.1} parent=0 // pred_check_branch
    %22 = sbr.rel (%p20) target = $region21
  $region20: #{tpu_custom_call.1} parent=0 // pred_region
    %vm23 = vcmask 0
    %24 = vst.msk [vmem:[%s4] sm:$0x1] %vm23, 0.0
    %25 = vst.msk [vmem:[%s4 + $0x1] sm:$0x1] %vm23, 0.0
    %26 = vst.msk [vmem:[%s5] sm:$0x1] %vm23, 0.0
    %27 = vst.msk [vmem:[%s5 + $0x1] sm:$0x1] %vm23, 0.0
  $region21: #{tpu_custom_call.1} parent=0 // pred_fallthru
    _
  %v28 = vld [vmem:[%s0] sm:$0xff]
  %v29 = vld [vmem:[%s0 + $0x8] sm:$0xff]
  %v30 = vld [vmem:[%s1] sm:$0xff]
  %v31 = vld [vmem:[%s1 + $0x8] sm:$0xff]
  %v32 = vld [vmem:[%s2] sm:$0xff]
  %v33 = vld [vmem:[%s2 + $0x8] sm:$0xff]
  %v34 = vld [vmem:[%s3] sm:$0xff]
  %v35 = vld [vmem:[%s3 + $0x8] sm:$0xff]
  %v36 = vlaneseq
  %v37 = vand.u32 %v36, 127
  %38 = vset.pattern.permute.xlu0 0
  %39 = vperm.xlu0 %38, %v30
  %v40 = vpop.permute.xlu0 %39
  %41 = vset.pattern.permute.xlu0 0
  %42 = vperm.xlu0 %41, %v31
  %v43 = vpop.permute.xlu0 %42
  %vm44 = vcmp.eq.s32.totalorder %v37, %v40
  %vm45 = vcmp.eq.s32.totalorder %v37, %v43
  %v46 = vsel %vm44, %v28, 0.0
  %v47 = vsel %vm45, %v29, 0.0
  %vm48 = vcmask 261120
  %v49 = vsel %vm48, %v46, 0.0
  %50 = vadd.xlane.f32.xlu0 %v49
  %v51 = vpop.xlane.xlu0 %50
  %v52 = vsel %vm48, %v47, 0.0
  %53 = vadd.xlane.f32.xlu0 %v52
  %v54 = vpop.xlane.xlu0 %53
  %s55 = smul.u32 0, 8
  %v56 = vlaneseq
  %v57 = vshrl.u32 %v56, 7
  %v58 = vstv %s55
  %v59 = vadd.s32 %v58, %v57
  %vm60 = vcmp.lt.s32.totalorder %v59, 8
  %v61 = vsub.f32 0.0, %v51
  %v62 = vsub.f32 0.0, %v54
  %v63 = vmul.f32 %v61, %v32
  %v64 = vmul.f32 %v62, %v33
  %v65 = vmul.f32 %v63, %v34
  %v66 = vmul.f32 %v64, %v35
  %v67 = vsel %vm60, %v65, 0.0
  %v68 = vsel %vm60, %v66, 0.0
  %v69 = vsel %vm60, %v34, 0.0
  %v70 = vsel %vm60, %v35, 0.0
  %v71 = vld [vmem:[%s4] sm:$0x1]
  %v72 = vld [vmem:[%s4 + $0x1] sm:$0x1]
  %vm73 = vcmask 7168
  %v74 = vsel %vm73, %v67, 0.0
  %v75 = vrot.slane %v74, 4
  %v76 = vadd.f32 %v74, %v75
  %v77 = vrot.slane %v76, 2
  %v78 = vadd.f32 %v76, %v77
  %v79 = vrot.slane %v78, 1
  %v80 = vadd.f32 %v78, %v79
  %v81 = vsel %vm73, %v68, 0.0
  %v82 = vrot.slane %v81, 4
  %v83 = vadd.f32 %v81, %v82
  %v84 = vrot.slane %v83, 2
  %v85 = vadd.f32 %v83, %v84
  %v86 = vrot.slane %v85, 1
  %v87 = vadd.f32 %v85, %v86
  %v88 = vadd.f32 %v71, %v80
  %v89 = vadd.f32 %v72, %v87
  %vm90 = vcmask 0
  %91 = vst.msk [vmem:[%s4] sm:$0x1] %vm90, %v88
  %92 = vst.msk [vmem:[%s4 + $0x1] sm:$0x1] %vm90, %v89
  %v93 = vld [vmem:[%s5] sm:$0x1]
  %v94 = vld [vmem:[%s5 + $0x1] sm:$0x1]
  %v95 = vsel %vm73, %v69, 0.0
  %v96 = vrot.slane %v95, 4
  %v97 = vadd.f32 %v95, %v96
  %v98 = vrot.slane %v97, 2
  %v99 = vadd.f32 %v97, %v98
  %v100 = vrot.slane %v99, 1
  %v101 = vadd.f32 %v99, %v100
  %v102 = vsel %vm73, %v70, 0.0
  %v103 = vrot.slane %v102, 4
  %v104 = vadd.f32 %v102, %v103
  %v105 = vrot.slane %v104, 2
  %v106 = vadd.f32 %v104, %v105
  %v107 = vrot.slane %v106, 1
  %v108 = vadd.f32 %v106, %v107
  %v109 = vadd.f32 %v93, %v101
  %v110 = vadd.f32 %v94, %v108
  %111 = vst.msk [vmem:[%s5] sm:$0x1] %vm90, %v109
  %112 = vst.msk [vmem:[%s5 + $0x1] sm:$0x1] %vm90, %v110
  // Predicated region
  $region22: #{tpu_custom_call.1} parent=0 // pred_check
    _
  $region23: #{tpu_custom_call.1} parent=0 // pred_check_branch
    %114 = sbr.rel (0) target = $region25
  $region24: #{tpu_custom_call.1} parent=0 // pred_region
    _
  $region25: #{tpu_custom_call.1} parent=0 // pred_fallthru
    _
  // Predicated region
  $region26: #{tpu_custom_call.1} parent=0 // pred_check
    _
  $region27: #{tpu_custom_call.1} parent=0 // pred_check_branch
    %116 = sbr.rel (0) target = $region29
  $region28: #{tpu_custom_call.1} parent=0 // pred_region
    _
  $region29: #{tpu_custom_call.1} parent=0 // pred_fallthru
    _
  // Predicated region
  $region30: #{tpu_custom_call.1} parent=0 // pred_check
    _
  $region31: #{tpu_custom_call.1} parent=0 // pred_check_branch
    %118 = sbr.rel (0) target = $region33
  $region32: #{tpu_custom_call.1} parent=0 // pred_region
    _
  $region33: #{tpu_custom_call.1} parent=0 // pred_fallthru
    _
  // Predicated region
  $region34: #{tpu_custom_call.1} parent=0 // pred_check
    _
  $region35: #{tpu_custom_call.1} parent=0 // pred_check_branch
    %120 = sbr.rel (0) target = $region37
  $region36: #{tpu_custom_call.1} parent=0 // pred_region
    _
  $region37: #{tpu_custom_call.1} parent=0 // pred_fallthru
    _

</llo_original>
